<compile_context>
chip_gen: v7x
topology: tpu7x:2x2x1
jax: 0.10.0
libtpu: 0.0.40
codegen_flags: <defaults>
</compile_context>

<pallas_src>
import functools

import jax
import jax.numpy as jnp
from jax.experimental import pallas as pl
from jax.experimental.pallas import tpu as pltpu

_EPS = 1e-12  # matches F.normalize(eps=1e-12)


def _round_up(x, m):
    return ((x + m - 1) // m) * m


def prompt_kernel(x_ref, ent_ref, o_ref, *, n_true, tile_n, tiles_per_split,
                  mask_rows):
    # x_ref  : (tile_n, D) VMEM  raw (un-normalized) input rows, bf16 or f32
    # ent_ref: (D, M)      VMEM  embed^T, pre-normalized in the wrapper (resident)
    # o_ref  : (1, 1, 1)   VMEM  per-split resident partial sum (f32)
    c = pl.program_id(0)            # parallel split (megacore on v7x)
    t = pl.program_id(1)            # serial tile index within the split
    g = c * tiles_per_split + t     # global tile index into the padded rows

    x_raw = x_ref[...]
    xf = x_raw.astype(jnp.float32)

    # Raw similarity on the MXU (bf16 x bf16 -> f32 when streaming bf16).
    sim = jax.lax.dot_general(
        x_raw, ent_ref[...], (((1,), (0,)), ((), ())),
        preferred_element_type=jnp.float32)                       # (tile, M)

    # Row normalization of x folded into a cheap epilogue scale; embed norms
    # are never recomputed here (pre-normalized, resident).
    inv_x = jax.lax.rsqrt(
        jnp.maximum(jnp.sum(xf * xf, axis=1, keepdims=True), _EPS * _EPS))
    sim = sim * inv_x                                             # (tile, M)

    # Lane-dense layout for the heavy epilogue: (M, tile) puts the long axis on
    # lanes, cutting VPU/EUP/XLU vreg count ~tile/(8*M)x when M << 128.
    simt = jnp.transpose(sim)                                     # (M, tile)

    # For unit vectors: (||a - b|| / 2)^2 = (1 - a.b) / 2
    h2 = jnp.clip(0.5 * (1.0 - simt), 0.0, 1.0)
    x0 = jnp.sqrt(h2)                                             # in [0, 1]

    # arcsin via Cephes asinf reduction + degree-4 polynomial
    # (sqrt / mul / add / select only; ~1e-7 relative error).
    big = x0 > 0.5
    zb = 0.5 * (1.0 - x0)
    z = jnp.where(big, zb, h2)            # small branch reuses h2 = x0^2
    xs = jnp.where(big, jnp.sqrt(zb), x0)
    p = ((((4.2163199048e-2 * z + 2.4181311049e-2) * z + 4.5470025998e-2) * z
          + 7.4953002686e-2) * z + 1.6666752422e-1)
    r = xs + xs * z * p
    asin = jnp.where(big, jnp.pi / 2.0 - 2.0 * r, r)

    dists = asin * asin                   # *2, /(N*M) and weight applied in wrapper

    @pl.when(t == 0)
    def _():
        o_ref[...] = jnp.zeros_like(o_ref)

    if mask_rows:
        touches_pad = (g + 1) * tile_n > n_true

        @pl.when(touches_pad)             # only tail tiles pay iota/cmp/select
        def _():
            col = g * tile_n + jax.lax.broadcasted_iota(jnp.int32, dists.shape, 1)
            masked = jnp.where(col < n_true, dists, 0.0)
            o_ref[...] += jnp.sum(masked, axis=(0, 1), keepdims=True).reshape(1, 1, 1)

        @pl.when((g + 1) * tile_n <= n_true)
        def _():
            o_ref[...] += jnp.sum(dists, axis=(0, 1), keepdims=True).reshape(1, 1, 1)
    else:
        o_ref[...] += jnp.sum(dists, axis=(0, 1), keepdims=True).reshape(1, 1, 1)


@functools.partial(jax.jit, static_argnames=("tile_n", "x_dtype", "num_splits"))
def prompt_forward(x, embed, weight, *, tile_n=1024, x_dtype=jnp.bfloat16,
                   num_splits=2):
    n, d = x.shape
    m = embed.shape[0]
    x_dtype = jnp.dtype(x_dtype)

    # Normalize embed once (constant buffer) and pre-transpose so the MXU RHS
    # is already (K, N).  Done in f32, then cast to the streaming dtype.
    en = embed.astype(jnp.float32)
    en = en / jnp.maximum(jnp.linalg.norm(en, axis=1, keepdims=True), _EPS)
    ent = en.T.astype(x_dtype)                         # (D, M), resident in VMEM

    # Stream x in x_dtype (bf16 default).  In a real pipeline feed x already in
    # bf16 so this cast fuses upstream instead of adding an HBM pass.
    xs = x.astype(x_dtype)

    # Tile rows: sublane granule 16 for bf16 packing, 8 for f32.
    granule = 16 if x_dtype == jnp.dtype(jnp.bfloat16) else 8
    tile = max(granule, min(_round_up(tile_n, granule), _round_up(n, granule)))

    # VMEM budget guard: v7x has only 64 MiB physical VMEM per TensorCore.
    budget = 56 * 1024 * 1024
    resident_bytes = d * m * x_dtype.itemsize
    if resident_bytes > budget:
        # TODO(synk): add a grid axis over M (tile the prompt bank) for very
        # large embed matrices that do not fit VMEM as a whole.
        raise ValueError("embed (D, M) does not fit in VMEM; needs M-tiling")
    max_tile = (budget - resident_bytes) // (3 * d * x_dtype.itemsize)
    if tile > max_tile:
        tile = max(granule, (max_tile // granule) * granule)

    tiles_needed = pl.cdiv(n, tile)
    splits = num_splits if tiles_needed >= num_splits else 1
    tiles_per_split = pl.cdiv(tiles_needed, splits)
    n_pad = splits * tiles_per_split * tile
    if n_pad != n:
        xs = jnp.pad(xs, ((0, n_pad - n), (0, 0)))

    kernel = functools.partial(
        prompt_kernel, n_true=n, tile_n=tile, tiles_per_split=tiles_per_split,
        mask_rows=(n_pad != n))

    needed = resident_bytes + 3 * tile * d * x_dtype.itemsize + (1 << 16)
    vmem_limit = int(min(60 * 1024 * 1024, max(32 * 1024 * 1024, 2 * needed)))

    partials = pl.pallas_call(
        kernel,
        out_shape=jax.ShapeDtypeStruct((splits, 1, 1), jnp.float32),
        grid=(splits, tiles_per_split),
        in_specs=[
            pl.BlockSpec((tile, d), lambda c, t: (c * tiles_per_split + t, 0)),
            pl.BlockSpec((d, m), lambda c, t: (0, 0)),       # resident embed^T
        ],
        out_specs=pl.BlockSpec((1, 1, 1), lambda c, t: (c, 0, 0)),
        compiler_params=pltpu.CompilerParams(
            dimension_semantics=("parallel", "arbitrary"),
            vmem_limit_bytes=vmem_limit),
    )(xs, ent)

    # |w| * mean(2*asin^2*sign(w)) == w * 2/(N*M) * sum(asin^2); the cross-split
    # reduction and the scalar scale live here so the splits stay race-free.
    w = jnp.asarray(weight, jnp.float32)
    return w * (2.0 / (n * m)) * jnp.sum(partials)


def prompt_ref(x, embed, weight):
    """Plain-JAX transcription of the PyTorch forward (for verification)."""
    xn = x[:, None, :] / jnp.maximum(
        jnp.linalg.norm(x[:, None, :], axis=2, keepdims=True), _EPS)
    en = embed[None, :, :] / jnp.maximum(
        jnp.linalg.norm(embed[None, :, :], axis=2, keepdims=True), _EPS)
    dd = jnp.linalg.norm(xn - en, axis=2)
    dists = 2.0 * jnp.arcsin(dd / 2.0) ** 2
    dists = dists * jnp.sign(weight)
    return jnp.abs(weight) * jnp.mean(dists)


if __name__ == "__main__":
    key = jax.random.PRNGKey(0)
    kx, ke = jax.random.split(key)

    N, M, D = 16, 4, 128            # N image-cutout embeddings, M prompt embeddings
    x = jax.random.normal(kx, (N, D), jnp.float32)       # forward input
    embed = jax.random.normal(ke, (M, D), jnp.float32)   # registered buffer 'embed'
    weight = jnp.float32(0.5)                            # registered buffer 'weight'
    # TODO(synk): 'stop' buffer / ReplaceGrad shape the backward pass only; the
    # forward pass of replace_grad is identity, so it has no kernel equivalent.

    ref = prompt_ref(x, embed, weight)

    # f32 path, multi-tile, 2-way parallel partial sums (exact parity check).
    out = jax.block_until_ready(
        prompt_forward(x, embed, weight, tile_n=8, x_dtype=jnp.float32))
    assert jnp.allclose(out, ref, rtol=1e-5, atol=1e-5), (float(out), float(ref))

    # Ragged N path (padding + tail-tile masking + true-N mean).
    x2 = x[:13]
    ref2 = prompt_ref(x2, embed, weight)
    out2 = jax.block_until_ready(
        prompt_forward(x2, embed, weight, tile_n=8, x_dtype=jnp.float32))
    assert jnp.allclose(out2, ref2, rtol=1e-5, atol=1e-5), (float(out2), float(ref2))

    # Default path: bf16 streaming (HBM-bound configuration), looser tolerance.
    out3 = jax.block_until_ready(prompt_forward(x, embed, weight))
    assert jnp.allclose(out3, ref, rtol=3e-2, atol=3e-2), (float(out3), float(ref))

    print("KERNEL_OK")
</pallas_src>

<mosaic_0001>
module attributes {stable_mosaic.version = 11 : i64} {
  func.func @prompt_kernel(%arg0: i32, %arg1: i32, %arg2: memref<8x128xf32, #tpu.memory_space<vmem>>, %arg3: memref<128x4xf32, #tpu.memory_space<vmem>>, %arg4: memref<1x1x1xf32, #tpu.memory_space<vmem>>) attributes {dimension_semantics = [#tpu.dimension_semantics<parallel>, #tpu.dimension_semantics<arbitrary>], iteration_bounds = array<i64: 2, 1>, scalar_prefetch = 0 : i64, scratch_operands = 0 : i64, tpu.core_type = #tpu.core_type<tc>, window_params = [{transform_indices = @transform_0, window_bounds = array<i64: 8, 128>}, {pipeline_mode = #tpu.pipeline_mode<synchronous>, transform_indices = @transform_1, window_bounds = array<i64: 128, 4>}, {transform_indices = @transform_2, window_bounds = array<i64: 1, 1, 1>}]} {
    %c0 = arith.constant 0 : index
    %c0_0 = arith.constant 0 : index
    %0 = vector.load %arg2[%c0, %c0_0] : memref<8x128xf32, #tpu.memory_space<vmem>>, vector<8x128xf32>
    %c0_1 = arith.constant 0 : index
    %c0_2 = arith.constant 0 : index
    %1 = vector.load %arg3[%c0_1, %c0_2] : memref<128x4xf32, #tpu.memory_space<vmem>>, vector<128x4xf32>
    %cst = arith.constant dense<0.000000e+00> : vector<8x4xf32>
    %2 = tpu.matmul %0, %1, %cst {dimension_numbers = #tpu.dot_dimension_numbers<[1], [0], [0], [1], [0, 0, 1, 1], [], []>} : vector<8x128xf32>, vector<128x4xf32>, vector<8x4xf32> -> vector<8x4xf32>
    %3 = arith.mulf %0, %0 : vector<8x128xf32>
    %cst_3 = arith.constant dense<0.000000e+00> : vector<8xf32>
    %4 = vector.multi_reduction <add>, %3, %cst_3 [1] : vector<8x128xf32> to vector<8xf32>
    %5 = vector.shape_cast %4 : vector<8xf32> to vector<8x1xf32>
    %cst_4 = arith.constant 1.000000e-24 : f32
    %6 = vector.broadcast %cst_4 : f32 to vector<8x1xf32>
    %7 = arith.maximumf %5, %6 : vector<8x1xf32>
    %8 = math.rsqrt %7 : vector<8x1xf32>
    %9 = vector.broadcast %8 : vector<8x1xf32> to vector<8x4xf32>
    %10 = arith.mulf %2, %9 : vector<8x4xf32>
    %11 = tpu.transpose %10, [1, 0] : vector<8x4xf32> -> vector<4x8xf32>
    %cst_5 = arith.constant 1.000000e+00 : f32
    %12 = vector.broadcast %cst_5 : f32 to vector<4x8xf32>
    %13 = arith.subf %12, %11 : vector<4x8xf32>
    %cst_6 = arith.constant 5.000000e-01 : f32
    %14 = vector.broadcast %cst_6 : f32 to vector<4x8xf32>
    %15 = arith.mulf %14, %13 : vector<4x8xf32>
    %cst_7 = arith.constant 0.000000e+00 : f32
    %cst_8 = arith.constant 1.000000e+00 : f32
    %16 = vector.broadcast %cst_7 : f32 to vector<4x8xf32>
    %17 = arith.maximumf %16, %15 : vector<4x8xf32>
    %18 = vector.broadcast %cst_8 : f32 to vector<4x8xf32>
    %19 = arith.minimumf %18, %17 : vector<4x8xf32>
    %20 = math.sqrt %19 : vector<4x8xf32>
    %cst_9 = arith.constant 5.000000e-01 : f32
    %21 = vector.broadcast %cst_9 : f32 to vector<4x8xf32>
    %22 = arith.cmpf ogt, %20, %21 : vector<4x8xf32>
    %cst_10 = arith.constant 1.000000e+00 : f32
    %23 = vector.broadcast %cst_10 : f32 to vector<4x8xf32>
    %24 = arith.subf %23, %20 : vector<4x8xf32>
    %cst_11 = arith.constant 5.000000e-01 : f32
    %25 = vector.broadcast %cst_11 : f32 to vector<4x8xf32>
    %26 = arith.mulf %25, %24 : vector<4x8xf32>
    %27 = arith.select %22, %26, %19 : vector<4x8xi1>, vector<4x8xf32>
    %28 = math.sqrt %26 : vector<4x8xf32>
    %29 = arith.select %22, %28, %20 : vector<4x8xi1>, vector<4x8xf32>
    %cst_12 = arith.constant 4.216320e-02 : f32
    %30 = vector.broadcast %cst_12 : f32 to vector<4x8xf32>
    %31 = arith.mulf %30, %27 : vector<4x8xf32>
    %cst_13 = arith.constant 0.024181312 : f32
    %32 = vector.broadcast %cst_13 : f32 to vector<4x8xf32>
    %33 = arith.addf %31, %32 : vector<4x8xf32>
    %34 = arith.mulf %33, %27 : vector<4x8xf32>
    %cst_14 = arith.constant 0.0454700254 : f32
    %35 = vector.broadcast %cst_14 : f32 to vector<4x8xf32>
    %36 = arith.addf %34, %35 : vector<4x8xf32>
    %37 = arith.mulf %36, %27 : vector<4x8xf32>
    %cst_15 = arith.constant 0.0749530047 : f32
    %38 = vector.broadcast %cst_15 : f32 to vector<4x8xf32>
    %39 = arith.addf %37, %38 : vector<4x8xf32>
    %40 = arith.mulf %39, %27 : vector<4x8xf32>
    %cst_16 = arith.constant 0.166667521 : f32
    %41 = vector.broadcast %cst_16 : f32 to vector<4x8xf32>
    %42 = arith.addf %40, %41 : vector<4x8xf32>
    %43 = arith.mulf %29, %27 : vector<4x8xf32>
    %44 = arith.mulf %43, %42 : vector<4x8xf32>
    %45 = arith.addf %29, %44 : vector<4x8xf32>
    %cst_17 = arith.constant 2.000000e+00 : f32
    %46 = vector.broadcast %cst_17 : f32 to vector<4x8xf32>
    %47 = arith.mulf %46, %45 : vector<4x8xf32>
    %cst_18 = arith.constant 1.57079637 : f32
    %48 = vector.broadcast %cst_18 : f32 to vector<4x8xf32>
    %49 = arith.subf %48, %47 : vector<4x8xf32>
    %50 = arith.select %22, %49, %45 : vector<4x8xi1>, vector<4x8xf32>
    %51 = arith.mulf %50, %50 : vector<4x8xf32>
    %c0_i32 = arith.constant 0 : i32
    %52 = arith.cmpi eq, %arg1, %c0_i32 : i32
    %53 = arith.extui %52 : i1 to i32
    %c0_i32_19 = arith.constant 0 : i32
    %54 = arith.cmpi ne, %53, %c0_i32_19 : i32
    scf.if %54 {
      %cst_27 = arith.constant 0.000000e+00 : f32
      %64 = vector.broadcast %cst_27 : f32 to vector<1x1x1xf32>
      %c0_28 = arith.constant 0 : index
      %c0_29 = arith.constant 0 : index
      %c0_30 = arith.constant 0 : index
      %65 = vector.load %arg4[%c0_28, %c0_29, %c0_30] : memref<1x1x1xf32, #tpu.memory_space<vmem>>, vector<1x1x1xf32>
      tpu.vector_store %arg4[%c0_28, %c0_29, %c0_30], %64 {strides = array<i32>} : memref<1x1x1xf32, #tpu.memory_space<vmem>>, vector<1x1x1xf32>,
    } else {
    }
    %c0_20 = arith.constant 0 : index
    %c0_21 = arith.constant 0 : index
    %c0_22 = arith.constant 0 : index
    %55 = vector.load %arg4[%c0_20, %c0_21, %c0_22] : memref<1x1x1xf32, #tpu.memory_space<vmem>>, vector<1x1x1xf32>
    %56 = vector.shape_cast %51 : vector<4x8xf32> to vector<1x4x8xf32>
    %cst_23 = arith.constant dense<0.000000e+00> : vector<1xf32>
    %57 = vector.multi_reduction <add>, %56, %cst_23 [1, 2] : vector<1x4x8xf32> to vector<1xf32>
    %58 = vector.shape_cast %57 : vector<1xf32> to vector<1x1x1xf32>
    %59 = vector.extract %58[0, 0, 0] : f32 from vector<1x1x1xf32>
    %60 = vector.broadcast %59 : f32 to vector<1x1xf32>
    %61 = vector.shape_cast %60 : vector<1x1xf32> to vector<1x1x1xf32>
    %62 = arith.addf %55, %61 : vector<1x1x1xf32>
    %c0_24 = arith.constant 0 : index
    %c0_25 = arith.constant 0 : index
    %c0_26 = arith.constant 0 : index
    %63 = vector.load %arg4[%c0_24, %c0_25, %c0_26] : memref<1x1x1xf32, #tpu.memory_space<vmem>>, vector<1x1x1xf32>
    tpu.vector_store %arg4[%c0_24, %c0_25, %c0_26], %62 {strides = array<i32>} : memref<1x1x1xf32, #tpu.memory_space<vmem>>, vector<1x1x1xf32>,
    return
  }
  func.func @transform_0(%arg0: i32, %arg1: i32) -> (i32, i32) {
    %c1_i32 = arith.constant 1 : i32
    %0 = arith.muli %arg0, %c1_i32 : i32
    %1 = arith.addi %0, %arg1 : i32
    %c0_i32 = arith.constant 0 : i32
    %c0_i32_0 = arith.constant 0 : i32
    return %1, %c0_i32 : i32, i32
  }
  func.func @transform_1(%arg0: i32, %arg1: i32) -> (i32, i32) {
    %c0_i32 = arith.constant 0 : i32
    %c0_i32_0 = arith.constant 0 : i32
    %c0_i32_1 = arith.constant 0 : i32
    return %c0_i32, %c0_i32_0 : i32, i32
  }
  func.func @transform_2(%arg0: i32, %arg1: i32) -> (i32, i32, i32) {
    %c0_i32 = arith.constant 0 : i32
    %c0_i32_0 = arith.constant 0 : i32
    %c0_i32_1 = arith.constant 0 : i32
    return %arg0, %c0_i32, %c0_i32_0 : i32, i32, i32
  }
}

</mosaic_0001>

<llo_original>
// kernel: prompt_forward.1
$region0: #{prompt_forward.1}
  #allocation0 [shape = 'u32[]', space=smem, size = 0x4, offset = 0x4, fixed_abs, tag = 'smem constant byte address 0x4 - core index']
  #allocation1 [shape = 'u32[144,128]{1,0:T(1,128)}', space=vmem, size = 0x12000, scoped, tag = 'internal scratch']
  %s0 = inlined_call_operand.vmem [shape: f32[16,128], index: 0, kind: input, shape index: {}]
  %s1 = inlined_call_operand.vmem [shape: f32[128,4], index: 1, kind: input, shape index: {}]
  %s2 = inlined_call_operand.vmem [shape: f32[2,1,1], index: 2, kind: output, shape index: {}]
  %s3 = sld [smem:[#allocation0]]
  $region45: #{prompt_forward.1} parent=0
    _
  %s5 = ssub.s32 1, %s3
  %s6 = scalar_select 0, %s5, %s3
  loop: start=0, step=1, limit=4
  $region2: #{prompt_forward.1} parent=0 // loop_pre_header
    _
  $region3: #{prompt_forward.1} parent=0 // loop_header
    %s8 = sphi 0, %s12
    %p9 = scmp.ge.s32.totalorder %s8, 4
    %s15 = sphi 0, %s27
    %s16 = sphi 0, %s23
    %s17 = sphi 0, %s15
    %s18 = sphi 0, %s16
    %s19 = sphi 0, %s17
    %s20 = sphi 0, %s18
    %s32 = sphi 0, %s34
    %s35 = sphi 0, %s32
    %s36 = sphi 0, %s35
    %s52 = sphi 0, %s36
    %s56 = sphi 0, %s56
    %s58 = sphi 0, %s56
    %s59 = sphi 0, %s58
    %s73 = sphi 0, %s59
    %s79 = sphi 0, %s81
    %s82 = sphi 0, %s79
    %s83 = sphi 0, %s82
    %s99 = sphi 0, %s83
  $region4: #{prompt_forward.1} parent=0 // loop_header_branch
    %11 = sbr.rel (%p9) target = $region8
  $region5: #{prompt_forward.1} parent=0 // loop_body
    %s13 = ssub.s32 %s8, 1
    %s14 = ssub.s32 %s8, 2
    %s21 = sadd.s32 1, %s16
    %p22 = scmp.ge.s32.totalorder %s21, 1
    %s23 = scalar_select %p22, 0, %s21
    %s24 = sadd.s32 1, %s15
    %s25 = scalar_select %p22, %s24, %s15
    %p26 = scmp.ge.s32.totalorder %s25, 2
    %s27 = scalar_select %p26, 0, %s25
    %s28 = sadd.s32 %s15, %s16
    %s29 = sadd.s32 %s27, %s23
    %s30 = ssub.s32 %s28, %s29
    %p31 = scmp.eq.s32.totalorder %s30, 0
    %s33 = sadd.s32 %s32, 1
    %s34 = scalar_select %p31, %s32, %s33
    %p37 = pneg %p31
    %p38 = scmp.eq.s32.totalorder %s8, 1
    %p39 = por %p37, %p38
    %p40 = scmp.ne.s32.totalorder %s32, %s35
    %p41 = scmp.eq.s32.totalorder %s8, 0
    %p42 = por %p40, %p41
    %p43 = scmp.ne.s32.totalorder %s32, %s35
    %p44 = scmp.eq.s32.totalorder %s13, 1
    %p45 = por %p43, %p44
    %p46 = scmp.ne.s32.totalorder %s35, %s36
    %p47 = scmp.eq.s32.totalorder %s13, 0
    %p48 = por %p46, %p47
    %p49 = scmp.ne.s32.totalorder %s35, %s36
    %p50 = scmp.eq.s32.totalorder %s14, 1
    %p51 = por %p49, %p50
    %p53 = scmp.ne.s32.totalorder %s36, %s52
    %p54 = scmp.eq.s32.totalorder %s14, 0
    %p55 = por %p53, %p54
    %s57 = sadd.s32 %s56, 1
    %p60 = scmp.eq.s32.totalorder %s8, 1
    %p61 = scmp.ne.s32.totalorder %s56, %s58
    %p62 = scmp.eq.s32.totalorder %s8, 0
    %p63 = por %p61, %p62
    %p64 = scmp.ne.s32.totalorder %s56, %s58
    %p65 = scmp.eq.s32.totalorder %s13, 1
    %p66 = por %p64, %p65
    %p67 = scmp.ne.s32.totalorder %s58, %s59
    %p68 = scmp.eq.s32.totalorder %s13, 0
    %p69 = por %p67, %p68
    %p70 = scmp.ne.s32.totalorder %s58, %s59
    %p71 = scmp.eq.s32.totalorder %s14, 1
    %p72 = por %p70, %p71
    %p74 = scmp.ne.s32.totalorder %s59, %s73
    %p75 = scmp.eq.s32.totalorder %s14, 0
    %p76 = por %p74, %p75
    %s77 = ssub.s32 %s15, %s27
    %p78 = scmp.eq.s32.totalorder %s77, 0
    %s80 = sadd.s32 %s79, 1
    %s81 = scalar_select %p78, %s79, %s80
    %p84 = pneg %p78
    %p85 = scmp.eq.s32.totalorder %s8, 1
    %p86 = por %p84, %p85
    %p87 = scmp.ne.s32.totalorder %s79, %s82
    %p88 = scmp.eq.s32.totalorder %s8, 0
    %p89 = por %p87, %p88
    %p90 = scmp.ne.s32.totalorder %s79, %s82
    %p91 = scmp.eq.s32.totalorder %s13, 1
    %p92 = por %p90, %p91
    %p93 = scmp.ne.s32.totalorder %s82, %s83
    %p94 = scmp.eq.s32.totalorder %s13, 0
    %p95 = por %p93, %p94
    %p96 = scmp.ne.s32.totalorder %s82, %s83
    %p97 = scmp.eq.s32.totalorder %s14, 1
    %p98 = por %p96, %p97
    %p100 = scmp.ne.s32.totalorder %s83, %s99
    %p101 = scmp.eq.s32.totalorder %s14, 0
    %p102 = por %p100, %p101
    %p103 = scmp.le.s32.totalorder 1, %s8
    %p104 = scmp.lt.s32.totalorder %s8, 3
    %p105 = pnand %p103, %p104
    %p106 = pneg %p105
    // Predicated region
    $region9: #{prompt_forward.1} parent=5 // pred_check
      _
    $region10: #{prompt_forward.1} parent=5 // pred_check_branch
      %108 = sbr.rel (%p105) target = $region12
    $region11: #{prompt_forward.1} parent=5 // pred_region
      %s109 = ssub.s32 %s8, 1
      // Predicated region
      $region13: #{prompt_forward.1} parent=11 // pred_check
        %p110 = pneg %p69
      $region14: #{prompt_forward.1} parent=11 // pred_check_branch
        %112 = sbr.rel (%p110) target = $region16
      $region15: #{prompt_forward.1} parent=11 // pred_region
        _
      $region16: #{prompt_forward.1} parent=11 // pred_fallthru
        _
    $region12: #{prompt_forward.1} parent=5 // pred_fallthru
      _
    %p113 = scmp.lt.s32.totalorder %s8, 2
    // Predicated region
    $region17: #{prompt_forward.1} parent=5 // pred_check
      %p114 = pneg %p113
    $region18: #{prompt_forward.1} parent=5 // pred_check_branch
      %116 = sbr.rel (%p114) target = $region20
    $region19: #{prompt_forward.1} parent=5 // pred_region
      // Predicated region
      $region21: #{prompt_forward.1} parent=19 // pred_check
        %p117 = pneg %p42
      $region22: #{prompt_forward.1} parent=19 // pred_check_branch
        %119 = sbr.rel (%p117) target = $region24
      $region23: #{prompt_forward.1} parent=19 // pred_region
        %s120 = sadd.s32 %s15, %s16
        %p121 = scmp.lt.s32.totalorder %s120, 1
        %s122 = scalar_select %p121, %s120, 1
        %s123 = smul.addr %s122, 8
        %s124 = scalar_lea.vmem %s0, %s123
        %s125 = sadd.s32 %s15, %s16
      $region24: #{prompt_forward.1} parent=19 // pred_fallthru
        _
    $region20: #{prompt_forward.1} parent=5 // pred_fallthru
      _
    %p126 = scmp.le.s32.totalorder 1, %s8
    %p127 = scmp.lt.s32.totalorder %s8, 3
    %p128 = pnand %p126, %p127
    %p129 = pneg %p128
    // Predicated region
    $region25: #{prompt_forward.1} parent=5 // pred_check
      _
    $region26: #{prompt_forward.1} parent=5 // pred_check_branch
      %131 = sbr.rel (%p128) target = $region28
    $region27: #{prompt_forward.1} parent=5 // pred_region
      %s132 = ssub.s32 %s8, 1
      %s133 = sadd.s32 %s17, %s18
      %p134 = scmp.lt.s32.totalorder %s133, 1
      %s135 = scalar_select %p134, %s133, 1
      %s136 = smul.addr %s135, 8
      %s137 = scalar_lea.vmem %s0, %s136
      %p138 = pneg %p48
      %p139 = pneg %p45
      %p140 = pneg %p69
      %p141 = pneg %p66
      %p142 = pneg %p95
      %p143 = pneg %p92
      %p144 = scmp.lt.s32.totalorder %s17, 1
      %s145 = scalar_select %p144, %s17, 1
      %s146 = scalar_lea.vmem %s2, %s145
      %s147 = sadd.s32 %s17, %s18
      %p148 = scmp.lt.s32.totalorder %s147, 1
      %s149 = scalar_select %p148, %s147, 1
      %s150 = smul.addr %s149, 8
      %s151 = scalar_lea.vmem %s0, %s150
      %s152 = sadd.s32 %s17, %s18
      %p153 = scmp.lt.s32.totalorder %s17, 1
      %s154 = scalar_select %p153, %s17, 1
      %s155 = scalar_lea.vmem %s2, %s154
      %v156 = vld [vmem:[%s151] sm:$0xff]
      %v157 = vld [vmem:[%s1] sm:$0xff]
      %v158 = vld [vmem:[%s1 + $0x8] sm:$0xff]
      %v159 = vld [vmem:[%s1 + $0x10] sm:$0xff]
      %v160 = vld [vmem:[%s1 + $0x18] sm:$0xff]
      %v161 = vld [vmem:[%s1 + $0x20] sm:$0xff]
      %v162 = vld [vmem:[%s1 + $0x28] sm:$0xff]
      %v163 = vld [vmem:[%s1 + $0x30] sm:$0xff]
      %v164 = vld [vmem:[%s1 + $0x38] sm:$0xff]
      %v165 = vld [vmem:[%s1 + $0x40] sm:$0xff]
      %v166 = vld [vmem:[%s1 + $0x48] sm:$0xff]
      %v167 = vld [vmem:[%s1 + $0x50] sm:$0xff]
      %v168 = vld [vmem:[%s1 + $0x58] sm:$0xff]
      %v169 = vld [vmem:[%s1 + $0x60] sm:$0xff]
      %v170 = vld [vmem:[%s1 + $0x68] sm:$0xff]
      %v171 = vld [vmem:[%s1 + $0x70] sm:$0xff]
      %v172 = vld [vmem:[%s1 + $0x78] sm:$0xff]
      %173 = vmatprep.subr.mxu0 0.0
      %174 = vmatpush1.msra.mxu0 %v157
      %175 = vmatprep.subr.mxu0 0.0
      %176 = vmatpush1.msra.mxu0 %v158
      %177 = vmatprep.subr.mxu0 0.0
      %178 = vmatpush1.msra.mxu0 %v159
      %179 = vmatprep.subr.mxu0 0.0
      %180 = vmatpush1.msra.mxu0 %v160
      %181 = vmatprep.subr.mxu0 0.0
      %182 = vmatpush1.msra.mxu0 %v161
      %183 = vmatprep.subr.mxu0 0.0
      %184 = vmatpush1.msra.mxu0 %v162
      %185 = vmatprep.subr.mxu0 0.0
      %186 = vmatpush1.msra.mxu0 %v163
      %187 = vmatprep.subr.mxu0 0.0
      %188 = vmatpush1.msra.mxu0 %v164
      %189 = vmatprep.subr.mxu0 0.0
      %190 = vmatpush1.msra.mxu0 %v165
      %191 = vmatprep.subr.mxu0 0.0
      %192 = vmatpush1.msra.mxu0 %v166
      %193 = vmatprep.subr.mxu0 0.0
      %194 = vmatpush1.msra.mxu0 %v167
      %195 = vmatprep.subr.mxu0 0.0
      %196 = vmatpush1.msra.mxu0 %v168
      %197 = vmatprep.subr.mxu0 0.0
      %198 = vmatpush1.msra.mxu0 %v169
      %199 = vmatprep.subr.mxu0 0.0
      %200 = vmatpush1.msra.mxu0 %v170
      %201 = vmatprep.subr.mxu0 0.0
      %202 = vmatpush1.msra.mxu0 %v171
      %203 = vmatprep.subr.mxu0 0.0
      %204 = vmatpush1.msra.mxu0 %v172
      %205 = vmatprep.subr.mxu0 0.0
      %206 = vmatpush1.msra.mxu0 0.0
      %207 = vmatprep.subr.mxu0 0.0
      %208 = vmatpush1.msra.mxu0 0.0
      %209 = vmatprep.subr.mxu0 0.0
      %210 = vmatpush1.msra.mxu0 0.0
      %211 = vmatprep.subr.mxu0 0.0
      %212 = vmatpush1.msra.mxu0 0.0
      %213 = vmatprep.subr.mxu0 0.0
      %214 = vmatpush1.msra.mxu0 0.0
      %215 = vmatprep.subr.mxu0 0.0
      %216 = vmatpush1.msra.mxu0 0.0
      %217 = vmatprep.subr.mxu0 0.0
      %218 = vmatpush1.msra.mxu0 0.0
      %219 = vmatprep.subr.mxu0 0.0
      %220 = vmatpush1.msra.mxu0 0.0
      %221 = vmatprep.subr.mxu0 0.0
      %222 = vmatpush1.msra.mxu0 0.0
      %223 = vmatprep.subr.mxu0 0.0
      %224 = vmatpush1.msra.mxu0 0.0
      %225 = vmatprep.subr.mxu0 0.0
      %226 = vmatpush1.msra.mxu0 0.0
      %227 = vmatprep.subr.mxu0 0.0
      %228 = vmatpush1.msra.mxu0 0.0
      %229 = vmatprep.subr.mxu0 0.0
      %230 = vmatpush1.msra.mxu0 0.0
      %231 = vmatprep.subr.mxu0 0.0
      %232 = vmatpush1.msra.mxu0 0.0
      %233 = vmatprep.subr.mxu0 0.0
      %234 = vmatpush1.msra.mxu0 0.0
      %235 = vmatprep.subr.mxu0 0.0
      %236 = vmatpush1.msra.mxu0 0.0
      %237 = vmatprep.mubr.f32.mxu0 0.0
      %238 = vmatmul.mubr.f32.gmra.mrb[0].mxu0 %v156
      %v239 = vpop.f32.mrb[0].mxu0
      %v240 = vadd.f32 0.0, %v239
      %v241 = vpop.f32.mrb[0].mxu0
      %242 = vdwg.mxu0
      %v243 = vmul.f32 %v156, %v156
      %244 = vadd.xlane.f32.xlu0 %v243
      %v245 = vpop.xlane.xlu0 %244
      %v246 = vmax.f32 %v245, 1e-24
      %v247 = vrsqrt.pop %v246
      %v248 = vmul.f32 %v240, %v247
      %249 = vxpose.xlu0.b32.start [1/16] %v248, 128
      %250 = vxpose.xlu0.b32.cont [2/16] 0.0, 128
      %251 = vxpose.xlu0.b32.cont [3/16] 0.0, 128
      %252 = vxpose.xlu0.b32.cont [4/16] 0.0, 128
      %253 = vxpose.xlu0.b32.cont [5/16] 0.0, 128
      %254 = vxpose.xlu0.b32.cont [6/16] 0.0, 128
      %255 = vxpose.xlu0.b32.cont [7/16] 0.0, 128
      %256 = vxpose.xlu0.b32.cont [8/16] 0.0, 128
      %257 = vxpose.xlu0.b32.cont [9/16] 0.0, 128
      %258 = vxpose.xlu0.b32.cont [10/16] 0.0, 128
      %259 = vxpose.xlu0.b32.cont [11/16] 0.0, 128
      %260 = vxpose.xlu0.b32.cont [12/16] 0.0, 128
      %261 = vxpose.xlu0.b32.cont [13/16] 0.0, 128
      %262 = vxpose.xlu0.b32.cont [14/16] 0.0, 128
      %263 = vxpose.xlu0.b32.cont [15/16] 0.0, 128
      %264 = vxpose.xlu0.b32.end [16/16] 0.0, 128
      %v265 = vpop.trf.xlu0
      %v266 = vpop.trf.xlu0
      %v267 = vpop.trf.xlu0
      %v268 = vpop.trf.xlu0
      %v269 = vpop.trf.xlu0
      %v270 = vpop.trf.xlu0
      %v271 = vpop.trf.xlu0
      %v272 = vpop.trf.xlu0
      %v273 = vpop.trf.xlu0
      %v274 = vpop.trf.xlu0
      %v275 = vpop.trf.xlu0
      %v276 = vpop.trf.xlu0
      %v277 = vpop.trf.xlu0
      %v278 = vpop.trf.xlu0
      %v279 = vpop.trf.xlu0
      %v280 = vpop.trf.xlu0
      %v281 = vsub.f32 1.0, %v265
      %v282 = vmul.f32 %v281, 0.5
      %v283 = vmax.f32 %v282, 0.0
      %v284 = vmin.f32 %v283, 1.0
      %v285 = vrsqrt.pop %v284
      %v286 = vmul.f32 %v284, %v285
      %vm287 = vcmp.eq.f32.partialorder %v284, inf
      %v288 = vsel %vm287, %v284, %v286
      %vm289 = vcmp.eq.f32.partialorder %v284, 0.0
      %v290 = vand.u32 %v284, 2147483648
      %v291 = vsel %vm289, %v290, %v288
      %vm292 = vcmp.gt.f32.partialorder %v291, 0.5
      %v293 = vsub.f32 1.0, %v291
      %v294 = vmul.f32 %v293, 0.5
      %v295 = vsel %vm292, %v294, %v284
      %v296 = vrsqrt.pop %v294
      %v297 = vmul.f32 %v294, %v296
      %vm298 = vcmp.eq.f32.partialorder %v294, inf
      %v299 = vsel %vm298, %v294, %v297
      %vm300 = vcmp.eq.f32.partialorder %v294, 0.0
      %v301 = vand.u32 %v294, 2147483648
      %v302 = vsel %vm300, %v301, %v299
      %v303 = vsel %vm292, %v302, %v291
      %v304 = vmul.f32 %v295, 0.0421632
      %v305 = vadd.f32 %v304, 0.024181312
      %v306 = vmul.f32 %v305, %v295
      %v307 = vadd.f32 %v306, 0.045470025
      %v308 = vmul.f32 %v307, %v295
      %v309 = vadd.f32 %v308, 0.074953005
      %v310 = vmul.f32 %v309, %v295
      %v311 = vadd.f32 %v310, 0.16666752
      %v312 = vmul.f32 %v303, %v295
      %v313 = vmul.f32 %v312, %v311
      %v314 = vadd.f32 %v303, %v313
      %v315 = vmul.f32 %v314, 2.0
      %v316 = vsub.f32 1.5707964, %v315
      %v317 = vsel %vm292, %v316, %v314
      %v318 = vmul.f32 %v317, %v317
      %p319 = scmp.eq.s32.totalorder %s18, 0
      // Predicated region
      $region29: #{prompt_forward.1} parent=27 // pred_check
        %p320 = pneg %p319
      $region30: #{prompt_forward.1} parent=27 // pred_check_branch
        %322 = sbr.rel (%p320) target = $region32
      $region31: #{prompt_forward.1} parent=27 // pred_region
        %vm323 = vcmask 0
        %324 = vst.msk [vmem:[%s155] sm:$0x1] %vm323, 0.0
      $region32: #{prompt_forward.1} parent=27 // pred_fallthru
        _
      %v325 = vld [vmem:[%s155] sm:$0x1]
      %vm326 = vcmask 60416
      %v327 = vsel %vm326, %v318, 0.0
      %328 = vadd.xlane.f32.xlu0 %v327
      %v329 = vpop.xlane.xlu0 %328
      %v330 = vrot.slane %v329, 4
      %v331 = vadd.f32 %v329, %v330
      %v332 = vrot.slane %v331, 2
      %v333 = vadd.f32 %v331, %v332
      %v334 = vrot.slane %v333, 1
      %v335 = vadd.f32 %v333, %v334
      %s336 = vtos %v335
      %v337 = vstv %s336
      %v338 = vadd.f32 %v325, %v337
      %vm339 = vcmask 0
      %340 = vst.msk [vmem:[%s155] sm:$0x1] %vm339, %v338
      %p341 = scmp.lt.s32.totalorder %s17, 1
      %s342 = scalar_select %p341, %s17, 1
      %s343 = scalar_lea.vmem %s2, %s342
      // Predicated region
      $region33: #{prompt_forward.1} parent=27 // pred_check
        %p344 = pneg %p92
      $region34: #{prompt_forward.1} parent=27 // pred_check_branch
        %346 = sbr.rel (%p344) target = $region36
      $region35: #{prompt_forward.1} parent=27 // pred_region
        _
      $region36: #{prompt_forward.1} parent=27 // pred_fallthru
        _
    $region28: #{prompt_forward.1} parent=5 // pred_fallthru
      _
    %p347 = scmp.le.s32.totalorder 2, %s8
    // Predicated region
    $region37: #{prompt_forward.1} parent=5 // pred_check
      %p348 = pneg %p347
    $region38: #{prompt_forward.1} parent=5 // pred_check_branch
      %350 = sbr.rel (%p348) target = $region40
    $region39: #{prompt_forward.1} parent=5 // pred_region
      %s351 = ssub.s32 %s8, 2
      // Predicated region
      $region41: #{prompt_forward.1} parent=39 // pred_check
        %p352 = pneg %p98
      $region42: #{prompt_forward.1} parent=39 // pred_check_branch
        %354 = sbr.rel (%p352) target = $region44
      $region43: #{prompt_forward.1} parent=39 // pred_region
        %p355 = scmp.lt.s32.totalorder %s19, 1
        %s356 = scalar_select %p355, %s19, 1
        %s357 = scalar_lea.vmem %s2, %s356
      $region44: #{prompt_forward.1} parent=39 // pred_fallthru
        _
    $region40: #{prompt_forward.1} parent=5 // pred_fallthru
      _
  $region6: #{prompt_forward.1} parent=0 // loop_footer
    %s12 = sadd.s32 1, %s8
  $region7: #{prompt_forward.1} parent=0 // loop_footer_branch
    %7 = sbr.rel target = $region3
  $region8: #{prompt_forward.1} parent=0 // loop_exit
    _

</llo_original>
